<compile_context>
chip_gen: v6e
topology: v6e:2x2x1
jax: 0.10.0
libtpu: 0.0.40
codegen_flags: <defaults>
</compile_context>

<pallas_src>
import functools

import jax
import jax.numpy as jnp
from jax.experimental import pallas as pl
from jax.experimental.pallas import tpu as pltpu

EPS = 1e-5


def mlp_kernel(x_ref, w1_ref, b1_ref, w2_ref, b2_ref, w3_ref, o_ref):
    """Fused 3-layer MLP; BatchNorm already folded into w2/b2 and the w3 row."""
    x = x_ref[...]                                               # (block_b, D) bf16

    # Linear(input_dim, 128) + ReLU   (bf16 operands, f32 accumulate on MXU)
    h1 = jnp.dot(x, w1_ref[...], preferred_element_type=jnp.float32) + b1_ref[...]
    h1 = jnp.maximum(h1, 0.0)
    # Dropout(0.2): identity in eval mode.

    # [BN1 folded] Linear(128, 64) + ReLU
    h2 = jnp.dot(h1.astype(w2_ref.dtype), w2_ref[...],
                 preferred_element_type=jnp.float32) + b2_ref[...]
    h2 = jnp.maximum(h2, 0.0)
    # Dropout(0.1): identity in eval mode.

    # [BN2 folded] Linear(64, 1), computed transposed so the store is lane-dense:
    # contract w3row (8, 64) with h2 (block_b, 64) on the 64-dim -> (8, block_b);
    # row 0 holds the real output (rows 1..7 are zero padding).  bf16 operands.
    out8 = jax.lax.dot_general(
        w3_ref[...], h2.astype(w3_ref.dtype),
        dimension_numbers=(((1,), (1,)), ((), ())),
        preferred_element_type=jnp.float32)
    o_ref[...] = out8[0:1, :].astype(o_ref.dtype)                # (1, block_b)


def _pick_block_b(B):
    """Batch tile: whole batch for small B, else a large 128-aligned divisor of B
    that keeps grid >= 2 (v7x dual-TC sharding)."""
    if B <= 512:
        return B
    for cand in (2048, 1024, 512, 256, 128):
        if cand <= B // 2 and B % cand == 0:
            return cand
    return B  # no 128-aligned divisor of B; fall back to a single grid step


@functools.partial(jax.jit, static_argnames=("block_b",))
def complex_nn_forward(x, folded_params, *, block_b=None):
    """x: (B, input_dim) float32; folded_params: output of fold_params()."""
    B, D = x.shape
    if block_b is None:
        block_b = _pick_block_b(B)
    assert B % block_b == 0, "batch must be divisible by block_b"
    assert block_b == B or block_b % 128 == 0, \
        "partial batch tiles must be 128-aligned (lane-dense output / bf16 packing)"

    w1, b1, w2, b2, w3row, b3 = folded_params
    grid = (B // block_b,)

    x_bf16 = x.astype(jnp.bfloat16)   # only large HBM stream -> halve its bytes

    def const2d(p):
        # Full-array block, constant across the grid (Pallas skips re-fetch).
        return pl.BlockSpec(p.shape, lambda i: (0, 0))

    out_row = pl.pallas_call(
        mlp_kernel,
        out_shape=jax.ShapeDtypeStruct((1, B), jnp.float32),
        grid_spec=pltpu.PrefetchScalarGridSpec(
            num_scalar_prefetch=0,
            grid=grid,
            in_specs=[
                pl.BlockSpec((block_b, D), lambda i: (i, 0)),     # x, batch-tiled
                const2d(w1), const2d(b1),
                const2d(w2), const2d(b2),
                const2d(w3row),
            ],
            out_specs=pl.BlockSpec((1, block_b), lambda i: (0, i)),
        ),
        compiler_params=pltpu.CompilerParams(
            dimension_semantics=("parallel",)),
    )(x_bf16, w1, b1, w2, b2, w3row)

    # Scalar output bias added outside the kernel (one fewer VMEM input ref).
    return (out_row + b3).reshape(B, 1)


def fold_params(raw_params, matmul_dtype=jnp.bfloat16):
    """Fold eval-mode BatchNorm into the following Linear and pack for the kernel."""
    (w1, b1, g1, be1, m1, v1,
     w2, b2, g2, be2, m2, v2,
     w3, b3) = raw_params

    s1 = g1 * jax.lax.rsqrt(v1 + EPS)            # (1, 128) BN1 scale
    t1 = be1 - m1 * s1                           # (1, 128) BN1 shift
    s2 = g2 * jax.lax.rsqrt(v2 + EPS)            # (1, 64)
    t2 = be2 - m2 * s2                           # (1, 64)

    # BN(h) @ W + b  ==  h @ (s^T * W) + (t @ W + b)
    w2f = w2 * s1.T                              # (128, 64)
    b2f = b2 + t1 @ w2                           # (1, 64)
    w3f = w3 * s2.T                              # (64, 1)
    b3f = b3 + t2 @ w3                           # (1, 1)

    # Final projection as a row, zero-padded to 8 sublanes, bf16 for a
    # single-pass MXU op.
    w3row = jnp.concatenate(
        [w3f.T, jnp.zeros((7, w3f.shape[0]), jnp.float32)], axis=0)  # (8, 64)

    return (w1.astype(matmul_dtype), b1.astype(jnp.float32),
            w2f.astype(matmul_dtype), b2f.astype(jnp.float32),
            w3row.astype(matmul_dtype), b3f.astype(jnp.float32))


def init_params(key, input_dim, h1=128, h2=64, out=1):
    """Deterministic parameter init matching the shapes in ComplexNN.__init__."""
    ks = jax.random.split(key, 10)

    def linear(kw, kb, fan_in, fan_out):
        bound = 1.0 / jnp.sqrt(fan_in)
        w = jax.random.uniform(kw, (fan_in, fan_out), jnp.float32, -bound, bound)
        b = jax.random.uniform(kb, (1, fan_out), jnp.float32, -bound, bound)
        return w, b

    w1, b1 = linear(ks[0], ks[1], input_dim, h1)
    w2, b2 = linear(ks[2], ks[3], h1, h2)
    w3, b3 = linear(ks[4], ks[5], h2, out)

    def bn(kg, km, feat):
        gamma = 1.0 + 0.1 * jax.random.normal(kg, (1, feat), jnp.float32)
        beta = 0.1 * jax.random.normal(jax.random.fold_in(kg, 1), (1, feat), jnp.float32)
        mean = 0.1 * jax.random.normal(km, (1, feat), jnp.float32)
        var = jnp.abs(1.0 + 0.1 * jax.random.normal(jax.random.fold_in(km, 1),
                                                    (1, feat), jnp.float32))
        return gamma, beta, mean, var

    g1, be1, m1, v1 = bn(ks[6], ks[7], h1)
    g2, be2, m2, v2 = bn(ks[8], ks[9], h2)

    return (w1, b1, g1, be1, m1, v1,
            w2, b2, g2, be2, m2, v2,
            w3, b3)


def reference_forward(x, raw_params):
    """Plain-JAX f32 reference of the original unfused eval-mode forward."""
    (w1, b1, g1, be1, m1, v1,
     w2, b2, g2, be2, m2, v2,
     w3, b3) = raw_params
    h1 = jnp.maximum(x @ w1 + b1, 0.0)
    h1 = (h1 - m1) * jax.lax.rsqrt(v1 + EPS) * g1 + be1
    h2 = jnp.maximum(h1 @ w2 + b2, 0.0)
    h2 = (h2 - m2) * jax.lax.rsqrt(v2 + EPS) * g2 + be2
    return h2 @ w3 + b3


def reference_forward_mirrored(x, folded_params):
    """Plain-JAX mirror of the kernel's exact math (folded BN + bf16 operands)."""
    w1, b1, w2, b2, w3row, b3 = folded_params
    xb = x.astype(jnp.bfloat16)
    h1 = jnp.maximum(jnp.dot(xb, w1, preferred_element_type=jnp.float32) + b1, 0.0)
    h2 = jnp.maximum(jnp.dot(h1.astype(w2.dtype), w2,
                             preferred_element_type=jnp.float32) + b2, 0.0)
    out8 = jax.lax.dot_general(w3row, h2.astype(w3row.dtype),
                               dimension_numbers=(((1,), (1,)), ((), ())),
                               preferred_element_type=jnp.float32)
    return (out8[0:1, :] + b3).reshape(-1, 1)


if __name__ == "__main__":
    key = jax.random.PRNGKey(0)
    k_x, k_p = jax.random.split(key)

    batch, input_dim = 16, 32
    x = jax.random.normal(k_x, (batch, input_dim), jnp.float32)
    raw_params = init_params(k_p, input_dim)
    folded = fold_params(raw_params)            # BN folded, bf16 matmul weights

    out = complex_nn_forward(x, folded)
    out = jax.block_until_ready(out)
    assert out.shape == (batch, 1), out.shape

    # Tight check vs a plain-JAX mirror of the kernel's math (bf16 x / w3 too).
    mirror = reference_forward_mirrored(x, folded)
    assert jnp.allclose(out, mirror, atol=2e-3, rtol=2e-3), \
        f"max abs err vs mirrored ref: {jnp.max(jnp.abs(out - mirror))}"

    # Loose check vs the original unfused f32 math (difference = bf16 rounding).
    exact = reference_forward(x, raw_params)
    assert jnp.allclose(out, exact, atol=1e-1, rtol=1e-1), \
        f"max abs err vs f32 ref: {jnp.max(jnp.abs(out - exact))}"

    print("KERNEL_OK")
</pallas_src>

<mosaic_0001>
module attributes {stable_mosaic.version = 11 : i64} {
  func.func @mlp_kernel(%arg0: i32, %arg1: memref<16x32xbf16, #tpu.memory_space<vmem>>, %arg2: memref<32x128xbf16, #tpu.memory_space<vmem>>, %arg3: memref<1x128xf32, #tpu.memory_space<vmem>>, %arg4: memref<128x64xbf16, #tpu.memory_space<vmem>>, %arg5: memref<1x64xf32, #tpu.memory_space<vmem>>, %arg6: memref<8x64xbf16, #tpu.memory_space<vmem>>, %arg7: memref<1x16xf32, #tpu.memory_space<vmem>>) attributes {dimension_semantics = [#tpu.dimension_semantics<parallel>], iteration_bounds = array<i64: 1>, scalar_prefetch = 0 : i64, scratch_operands = 0 : i64, tpu.core_type = #tpu.core_type<tc>, window_params = [{transform_indices = @transform_0, window_bounds = array<i64: 16, 32>}, {pipeline_mode = #tpu.pipeline_mode<synchronous>, transform_indices = @transform_1, window_bounds = array<i64: 32, 128>}, {pipeline_mode = #tpu.pipeline_mode<synchronous>, transform_indices = @transform_2, window_bounds = array<i64: 1, 128>}, {pipeline_mode = #tpu.pipeline_mode<synchronous>, transform_indices = @transform_3, window_bounds = array<i64: 128, 64>}, {pipeline_mode = #tpu.pipeline_mode<synchronous>, transform_indices = @transform_4, window_bounds = array<i64: 1, 64>}, {pipeline_mode = #tpu.pipeline_mode<synchronous>, transform_indices = @transform_5, window_bounds = array<i64: 8, 64>}, {transform_indices = @transform_6, window_bounds = array<i64: 1, 16>}]} {
    %c0 = arith.constant 0 : index
    %c0_0 = arith.constant 0 : index
    %0 = vector.load %arg1[%c0, %c0_0] : memref<16x32xbf16, #tpu.memory_space<vmem>>, vector<16x32xbf16>
    %c0_1 = arith.constant 0 : index
    %c0_2 = arith.constant 0 : index
    %1 = vector.load %arg2[%c0_1, %c0_2] : memref<32x128xbf16, #tpu.memory_space<vmem>>, vector<32x128xbf16>
    %cst = arith.constant dense<0.000000e+00> : vector<16x128xf32>
    %2 = tpu.matmul %0, %1, %cst {dimension_numbers = #tpu.dot_dimension_numbers<[1], [0], [0], [1], [0, 0, 1, 1], [], []>} : vector<16x32xbf16>, vector<32x128xbf16>, vector<16x128xf32> -> vector<16x128xf32>
    %c0_3 = arith.constant 0 : index
    %c0_4 = arith.constant 0 : index
    %3 = vector.load %arg3[%c0_3, %c0_4] : memref<1x128xf32, #tpu.memory_space<vmem>>, vector<1x128xf32>
    %4 = vector.broadcast %3 : vector<1x128xf32> to vector<16x128xf32>
    %5 = arith.addf %2, %4 : vector<16x128xf32>
    %cst_5 = arith.constant 0.000000e+00 : f32
    %6 = vector.broadcast %cst_5 : f32 to vector<16x128xf32>
    %7 = arith.maximumf %5, %6 : vector<16x128xf32>
    %8 = arith.truncf %7 : vector<16x128xf32> to vector<16x128xbf16>
    %c0_6 = arith.constant 0 : index
    %c0_7 = arith.constant 0 : index
    %9 = vector.load %arg4[%c0_6, %c0_7] : memref<128x64xbf16, #tpu.memory_space<vmem>>, vector<128x64xbf16>
    %cst_8 = arith.constant dense<0.000000e+00> : vector<16x64xf32>
    %10 = tpu.matmul %8, %9, %cst_8 {dimension_numbers = #tpu.dot_dimension_numbers<[1], [0], [0], [1], [0, 0, 1, 1], [], []>} : vector<16x128xbf16>, vector<128x64xbf16>, vector<16x64xf32> -> vector<16x64xf32>
    %c0_9 = arith.constant 0 : index
    %c0_10 = arith.constant 0 : index
    %11 = vector.load %arg5[%c0_9, %c0_10] : memref<1x64xf32, #tpu.memory_space<vmem>>, vector<1x64xf32>
    %12 = vector.broadcast %11 : vector<1x64xf32> to vector<16x64xf32>
    %13 = arith.addf %10, %12 : vector<16x64xf32>
    %cst_11 = arith.constant 0.000000e+00 : f32
    %14 = vector.broadcast %cst_11 : f32 to vector<16x64xf32>
    %15 = arith.maximumf %13, %14 : vector<16x64xf32>
    %c0_12 = arith.constant 0 : index
    %c0_13 = arith.constant 0 : index
    %16 = vector.load %arg6[%c0_12, %c0_13] : memref<8x64xbf16, #tpu.memory_space<vmem>>, vector<8x64xbf16>
    %17 = arith.truncf %15 : vector<16x64xf32> to vector<16x64xbf16>
    %cst_14 = arith.constant dense<0.000000e+00> : vector<8x16xf32>
    %18 = tpu.matmul %16, %17, %cst_14 {dimension_numbers = #tpu.dot_dimension_numbers<[1], [1], [0], [0], [0, 0, 1, 0], [], []>} : vector<8x64xbf16>, vector<16x64xbf16>, vector<8x16xf32> -> vector<8x16xf32>
    %19 = vector.extract_strided_slice %18 {offsets = [0, 0], sizes = [1, 16], strides = [1, 1]} : vector<8x16xf32> to vector<1x16xf32>
    %c0_15 = arith.constant 0 : index
    %c0_16 = arith.constant 0 : index
    %20 = vector.load %arg7[%c0_15, %c0_16] : memref<1x16xf32, #tpu.memory_space<vmem>>, vector<1x16xf32>
    tpu.vector_store %arg7[%c0_15, %c0_16], %19 {strides = array<i32>} : memref<1x16xf32, #tpu.memory_space<vmem>>, vector<1x16xf32>,
    return
  }
  func.func @transform_0(%arg0: i32) -> (i32, i32) {
    %c0_i32 = arith.constant 0 : i32
    %c0_i32_0 = arith.constant 0 : i32
    return %arg0, %c0_i32 : i32, i32
  }
  func.func @transform_1(%arg0: i32) -> (i32, i32) {
    %c0_i32 = arith.constant 0 : i32
    %c0_i32_0 = arith.constant 0 : i32
    %c0_i32_1 = arith.constant 0 : i32
    return %c0_i32, %c0_i32_0 : i32, i32
  }
  func.func @transform_2(%arg0: i32) -> (i32, i32) {
    %c0_i32 = arith.constant 0 : i32
    %c0_i32_0 = arith.constant 0 : i32
    %c0_i32_1 = arith.constant 0 : i32
    return %c0_i32, %c0_i32_0 : i32, i32
  }
  func.func @transform_3(%arg0: i32) -> (i32, i32) {
    %c0_i32 = arith.constant 0 : i32
    %c0_i32_0 = arith.constant 0 : i32
    %c0_i32_1 = arith.constant 0 : i32
    return %c0_i32, %c0_i32_0 : i32, i32
  }
  func.func @transform_4(%arg0: i32) -> (i32, i32) {
    %c0_i32 = arith.constant 0 : i32
    %c0_i32_0 = arith.constant 0 : i32
    %c0_i32_1 = arith.constant 0 : i32
    return %c0_i32, %c0_i32_0 : i32, i32
  }
  func.func @transform_5(%arg0: i32) -> (i32, i32) {
    %c0_i32 = arith.constant 0 : i32
    %c0_i32_0 = arith.constant 0 : i32
    %c0_i32_1 = arith.constant 0 : i32
    return %c0_i32, %c0_i32_0 : i32, i32
  }
  func.func @transform_6(%arg0: i32) -> (i32, i32) {
    %c0_i32 = arith.constant 0 : i32
    %c0_i32_0 = arith.constant 0 : i32
    return %c0_i32, %arg0 : i32, i32
  }
}

</mosaic_0001>

<llo_original>
// kernel: complex_nn_forward.1
$region0: #{complex_nn_forward.1}
  #allocation0 [shape = 'u32[]', space=smem, size = 0x4, offset = 0x4, fixed_abs, tag = 'smem constant byte address 0x4 - core index']
  #allocation1 [shape = 'u32[144,128]{1,0:T(1,128)}', space=vmem, size = 0x12000, scoped, tag = 'internal scratch']
  %s0 = inlined_call_operand.vmem [shape: bf16[16,32], index: 0, kind: input, shape index: {}]
  %s1 = inlined_call_operand.vmem [shape: bf16[32,128], index: 1, kind: input, shape index: {}]
  %s2 = inlined_call_operand.vmem [shape: f32[1,128], index: 2, kind: input, shape index: {}]
  %s3 = inlined_call_operand.vmem [shape: bf16[128,64], index: 3, kind: input, shape index: {}]
  %s4 = inlined_call_operand.vmem [shape: f32[1,64], index: 4, kind: input, shape index: {}]
  %s5 = inlined_call_operand.vmem [shape: bf16[8,64], index: 5, kind: input, shape index: {}]
  %s6 = inlined_call_operand.vmem [shape: f32[1,16], index: 6, kind: output, shape index: {}]
  %s7 = sld [smem:[#allocation0]]
  $region34: #{complex_nn_forward.1} parent=0
    _
  %s9 = ssub.s32 1, %s7
  %s10 = scalar_select 0, %s9, %s7
  // Predicated region
  $region2: #{complex_nn_forward.1} parent=0 // pred_check
    _
  $region3: #{complex_nn_forward.1} parent=0 // pred_check_branch
    %12 = sbr.rel (0) target = $region5
  $region4: #{complex_nn_forward.1} parent=0 // pred_region
    _
  $region5: #{complex_nn_forward.1} parent=0 // pred_fallthru
    _
  // Predicated region
  $region6: #{complex_nn_forward.1} parent=0 // pred_check
    _
  $region7: #{complex_nn_forward.1} parent=0 // pred_check_branch
    %14 = sbr.rel (0) target = $region9
  $region8: #{complex_nn_forward.1} parent=0 // pred_region
    _
  $region9: #{complex_nn_forward.1} parent=0 // pred_fallthru
    _
  // Predicated region
  $region10: #{complex_nn_forward.1} parent=0 // pred_check
    _
  $region11: #{complex_nn_forward.1} parent=0 // pred_check_branch
    %16 = sbr.rel (0) target = $region13
  $region12: #{complex_nn_forward.1} parent=0 // pred_region
    _
  $region13: #{complex_nn_forward.1} parent=0 // pred_fallthru
    _
  // Predicated region
  $region14: #{complex_nn_forward.1} parent=0 // pred_check
    _
  $region15: #{complex_nn_forward.1} parent=0 // pred_check_branch
    %18 = sbr.rel (0) target = $region17
  $region16: #{complex_nn_forward.1} parent=0 // pred_region
    _
  $region17: #{complex_nn_forward.1} parent=0 // pred_fallthru
    _
  // Predicated region
  $region18: #{complex_nn_forward.1} parent=0 // pred_check
    _
  $region19: #{complex_nn_forward.1} parent=0 // pred_check_branch
    %20 = sbr.rel (0) target = $region21
  $region20: #{complex_nn_forward.1} parent=0 // pred_region
    _
  $region21: #{complex_nn_forward.1} parent=0 // pred_fallthru
    _
  // Predicated region
  $region22: #{complex_nn_forward.1} parent=0 // pred_check
    _
  $region23: #{complex_nn_forward.1} parent=0 // pred_check_branch
    %22 = sbr.rel (0) target = $region25
  $region24: #{complex_nn_forward.1} parent=0 // pred_region
    _
  $region25: #{complex_nn_forward.1} parent=0 // pred_fallthru
    _
  %v24 = vld [vmem:[%s0] sm:$0xf]
  %v25 = vld [vmem:[%s0 + $0x4] sm:$0xf]
  %v26 = vld [vmem:[%s1] sm:$0xf]
  %v27 = vld [vmem:[%s1 + $0x4] sm:$0xf]
  %v28 = vld [vmem:[%s1 + $0x8] sm:$0xf]
  %v29 = vld [vmem:[%s1 + $0xc] sm:$0xf]
  %v30 = vld [vmem:[%s2] sm:$0x1]
  %v32 = vlaneseq
  %v33 = vshrl.u32 %v32, 7
  %v34 = vsub.s32 0, %v33
  %v35 = vrot.slane %v30, %v34
  %v39 = vunpack.c.l.b16 %v24
  %v40 = vunpack.c.l.b16 %v25
  %v41 = vpack.c.b16 %v40, %v39
  %v46 = vunpack.c.l.b16 %v26
  %v47 = vunpack.c.l.b16 %v27
  %v48 = vunpack.c.l.b16 %v28
  %v49 = vunpack.c.l.b16 %v29
  %v50 = vpack.c.b16 %v47, %v46
  %v51 = vpack.c.b16 %v49, %v48
  %vm54 = vcmask 261120
  %v56 = vsel %vm54, %v41, 0
  %58 = vmatprep.subr.bf16.mxu0 0
  %59 = vmatpush1.bf16.msra.mxu0 0
  %60 = vmatprep.subr.bf16.mxu0 0
  %61 = vmatpush1.bf16.msra.mxu0 0
  %62 = vmatprep.subr.bf16.mxu0 0
  %63 = vmatpush1.bf16.msra.mxu0 0
  %64 = vmatprep.subr.bf16.mxu0 0
  %65 = vmatpush1.bf16.msra.mxu0 0
  %66 = vmatprep.subr.bf16.mxu0 0
  %67 = vmatpush1.bf16.msra.mxu0 0
  %68 = vmatprep.subr.bf16.mxu0 0
  %69 = vmatpush1.bf16.msra.mxu0 0
  %70 = vmatprep.subr.bf16.mxu0 0
  %71 = vmatpush1.bf16.msra.mxu0 %v51
  %72 = vmatprep.subr.bf16.mxu0 0
  %73 = vmatpush1.bf16.msra.mxu0 %v50
  %74 = vmatprep.subr.bf16.mxu0 0
  %75 = vmatpush2.bf16.msra.mxu0 0
  %76 = vmatprep.subr.bf16.mxu0 0
  %77 = vmatpush2.bf16.msra.mxu0 0
  %78 = vmatprep.subr.bf16.mxu0 0
  %79 = vmatpush2.bf16.msra.mxu0 0
  %80 = vmatprep.subr.bf16.mxu0 0
  %81 = vmatpush2.bf16.msra.mxu0 0
  %82 = vmatprep.subr.bf16.mxu0 0
  %83 = vmatpush2.bf16.msra.mxu0 0
  %84 = vmatprep.subr.bf16.mxu0 0
  %85 = vmatpush2.bf16.msra.mxu0 0
  %86 = vmatprep.subr.bf16.mxu0 0
  %87 = vmatpush2.bf16.msra.mxu0 0
  %88 = vmatprep.subr.bf16.mxu0 0
  %89 = vmatpush2.bf16.msra.mxu0 0
  %90 = vmatprep.mubr.bf16.mxu0 0
  %91 = vmatmul.mubr.bf16.gmra.mxu0 %v56
  %v92 = vpop.f32.mrf.mxu0
  %v93 = vadd.f32 %v35, %v92
  %v94 = vpop.f32.mrf.mxu0
  %v95 = vpop.f32.mrf.mxu0
  %v96 = vadd.f32 %v35, %v95
  %v97 = vpop.f32.mrf.mxu0
  %98 = vdwg.mxu0
  %v99 = vmax.f32 %v93, 0.0
  %v100 = vmax.f32 %v96, 0.0
  %v101 = vpack.c.bf16 %v100, %v99
  %v102 = vld [vmem:[%s3] sm:$0xf]
  %v103 = vld [vmem:[%s3 + $0x4] sm:$0xf]
  %v104 = vld [vmem:[%s3 + $0x8] sm:$0xf]
  %v105 = vld [vmem:[%s3 + $0xc] sm:$0xf]
  %v106 = vld [vmem:[%s3 + $0x10] sm:$0xf]
  %v107 = vld [vmem:[%s3 + $0x14] sm:$0xf]
  %v108 = vld [vmem:[%s3 + $0x18] sm:$0xf]
  %v109 = vld [vmem:[%s3 + $0x1c] sm:$0xf]
  %v110 = vld [vmem:[%s3 + $0x20] sm:$0xf]
  %v111 = vld [vmem:[%s3 + $0x24] sm:$0xf]
  %v112 = vld [vmem:[%s3 + $0x28] sm:$0xf]
  %v113 = vld [vmem:[%s3 + $0x2c] sm:$0xf]
  %v114 = vld [vmem:[%s3 + $0x30] sm:$0xf]
  %v115 = vld [vmem:[%s3 + $0x34] sm:$0xf]
  %v116 = vld [vmem:[%s3 + $0x38] sm:$0xf]
  %v117 = vld [vmem:[%s3 + $0x3c] sm:$0xf]
  %v118 = vld [vmem:[%s4] sm:$0x1]
  %v120 = vlaneseq
  %v121 = vshrl.u32 %v120, 7
  %v122 = vsub.s32 0, %v121
  %v123 = vrot.slane %v118, %v122
  %v141 = vunpack.c.l.b16 %v102
  %v142 = vunpack.c.l.b16 %v103
  %v143 = vunpack.c.l.b16 %v104
  %v144 = vunpack.c.l.b16 %v105
  %v145 = vunpack.c.l.b16 %v106
  %v146 = vunpack.c.l.b16 %v107
  %v147 = vunpack.c.l.b16 %v108
  %v148 = vunpack.c.l.b16 %v109
  %v149 = vunpack.c.l.b16 %v110
  %v150 = vunpack.c.l.b16 %v111
  %v151 = vunpack.c.l.b16 %v112
  %v152 = vunpack.c.l.b16 %v113
  %v153 = vunpack.c.l.b16 %v114
  %v154 = vunpack.c.l.b16 %v115
  %v155 = vunpack.c.l.b16 %v116
  %v156 = vunpack.c.l.b16 %v117
  %v157 = vpack.c.b16 %v142, %v141
  %v158 = vpack.c.b16 %v144, %v143
  %v159 = vpack.c.b16 %v146, %v145
  %v160 = vpack.c.b16 %v148, %v147
  %v161 = vpack.c.b16 %v150, %v149
  %v162 = vpack.c.b16 %v152, %v151
  %v163 = vpack.c.b16 %v154, %v153
  %v164 = vpack.c.b16 %v156, %v155
  %173 = vmatprep.subr.bf16.mxu0 0
  %174 = vmatpush1.bf16.msra.mxu0 %v164
  %175 = vmatprep.subr.bf16.mxu0 0
  %176 = vmatpush1.bf16.msra.mxu0 %v163
  %177 = vmatprep.subr.bf16.mxu0 0
  %178 = vmatpush1.bf16.msra.mxu0 %v162
  %179 = vmatprep.subr.bf16.mxu0 0
  %180 = vmatpush1.bf16.msra.mxu0 %v161
  %181 = vmatprep.subr.bf16.mxu0 0
  %182 = vmatpush1.bf16.msra.mxu0 %v160
  %183 = vmatprep.subr.bf16.mxu0 0
  %184 = vmatpush1.bf16.msra.mxu0 %v159
  %185 = vmatprep.subr.bf16.mxu0 0
  %186 = vmatpush1.bf16.msra.mxu0 %v158
  %187 = vmatprep.subr.bf16.mxu0 0
  %188 = vmatpush1.bf16.msra.mxu0 %v157
  %189 = vmatprep.subr.bf16.mxu0 0
  %190 = vmatpush2.bf16.msra.mxu0 0
  %191 = vmatprep.subr.bf16.mxu0 0
  %192 = vmatpush2.bf16.msra.mxu0 0
  %193 = vmatprep.subr.bf16.mxu0 0
  %194 = vmatpush2.bf16.msra.mxu0 0
  %195 = vmatprep.subr.bf16.mxu0 0
  %196 = vmatpush2.bf16.msra.mxu0 0
  %197 = vmatprep.subr.bf16.mxu0 0
  %198 = vmatpush2.bf16.msra.mxu0 0
  %199 = vmatprep.subr.bf16.mxu0 0
  %200 = vmatpush2.bf16.msra.mxu0 0
  %201 = vmatprep.subr.bf16.mxu0 0
  %202 = vmatpush2.bf16.msra.mxu0 0
  %203 = vmatprep.subr.bf16.mxu0 0
  %204 = vmatpush2.bf16.msra.mxu0 0
  %205 = vmatprep.mubr.bf16.mxu0 0
  %206 = vmatmul.mubr.bf16.gmra.mxu0 %v101
  %v207 = vpop.f32.mrf.mxu0
  %v208 = vadd.f32 %v123, %v207
  %v209 = vpop.f32.mrf.mxu0
  %v210 = vpop.f32.mrf.mxu0
  %v211 = vadd.f32 %v123, %v210
  %v212 = vpop.f32.mrf.mxu0
  %213 = vdwg.mxu0
  %v214 = vmax.f32 %v208, 0.0
  %v215 = vmax.f32 %v211, 0.0
  %v216 = vld [vmem:[%s5] sm:$0xf]
  %v217 = vpack.c.bf16 %v215, %v214
  %vm218 = vcmask 523264
  %v220 = vsel %vm218, %v216, 0
  %v223 = vsel %vm218, %v217, 0
  %225 = vmatprep.subr.bf16.mxu0 0
  %226 = vmatpush1.bf16.xpose.msra.mxu0 0
  %227 = vmatprep.subr.bf16.mxu0 0
  %228 = vmatpush1.bf16.xpose.msra.mxu0 0
  %229 = vmatprep.subr.bf16.mxu0 0
  %230 = vmatpush1.bf16.xpose.msra.mxu0 0
  %231 = vmatprep.subr.bf16.mxu0 0
  %232 = vmatpush1.bf16.xpose.msra.mxu0 0
  %233 = vmatprep.subr.bf16.mxu0 0
  %234 = vmatpush1.bf16.xpose.msra.mxu0 0
  %235 = vmatprep.subr.bf16.mxu0 0
  %236 = vmatpush1.bf16.xpose.msra.mxu0 0
  %237 = vmatprep.subr.bf16.mxu0 0
  %238 = vmatpush1.bf16.xpose.msra.mxu0 0
  %239 = vmatprep.subr.bf16.mxu0 0
  %240 = vmatpush1.bf16.xpose.msra.mxu0 %v223
  %241 = vmatprep.subr.bf16.mxu0 0
  %242 = vmatpush2.bf16.xpose.msra.mxu0 0
  %243 = vmatprep.subr.bf16.mxu0 0
  %244 = vmatpush2.bf16.xpose.msra.mxu0 0
  %245 = vmatprep.subr.bf16.mxu0 0
  %246 = vmatpush2.bf16.xpose.msra.mxu0 0
  %247 = vmatprep.subr.bf16.mxu0 0
  %248 = vmatpush2.bf16.xpose.msra.mxu0 0
  %249 = vmatprep.subr.bf16.mxu0 0
  %250 = vmatpush2.bf16.xpose.msra.mxu0 0
  %251 = vmatprep.subr.bf16.mxu0 0
  %252 = vmatpush2.bf16.xpose.msra.mxu0 0
  %253 = vmatprep.subr.bf16.mxu0 0
  %254 = vmatpush2.bf16.xpose.msra.mxu0 0
  %255 = vmatprep.subr.bf16.mxu0 0
  %256 = vmatpush2.bf16.xpose.msra.mxu0 0
  %257 = vmatprep.mubr.bf16.mxu0 0
  %258 = vmatmul.mubr.bf16.gmra.mxu0 %v220
  %v259 = vpop.f32.mrf.mxu0
  %v260 = vadd.f32 0.0, %v259
  %v261 = vpop.f32.mrf.mxu0
  %v262 = vpop.f32.mrf.mxu0
  %v263 = vpop.f32.mrf.mxu0
  %264 = vdwg.mxu0
  %vm265 = vcmask 122880
  %266 = vst.msk [vmem:[%s6] sm:$0x1] %vm265, %v260
  // Predicated region
  $region26: #{complex_nn_forward.1} parent=0 // pred_check
    _
  $region27: #{complex_nn_forward.1} parent=0 // pred_check_branch
    %268 = sbr.rel (0) target = $region29
  $region28: #{complex_nn_forward.1} parent=0 // pred_region
    _
  $region29: #{complex_nn_forward.1} parent=0 // pred_fallthru
    _
  // Predicated region
  $region30: #{complex_nn_forward.1} parent=0 // pred_check
    _
  $region31: #{complex_nn_forward.1} parent=0 // pred_check_branch
    %270 = sbr.rel (0) target = $region33
  $region32: #{complex_nn_forward.1} parent=0 // pred_region
    _
  $region33: #{complex_nn_forward.1} parent=0 // pred_fallthru
    _

</llo_original>
